<compile_context>
chip_gen: v6e
topology: v6e:2x2x1
jax: 0.10.0
libtpu: 0.0.40
codegen_flags: <defaults>
</compile_context>

<pallas_src>
import functools
import math

import jax
import jax.numpy as jnp
from jax.experimental import pallas as pl
from jax.experimental.pallas import tpu as pltpu


def _round_up(x, m):
    return (x + m - 1) // m * m


def _pad2(a, rows, cols):
    pr, pc = rows - a.shape[0], cols - a.shape[1]
    if pr == 0 and pc == 0:
        return a                      # already aligned: no padded copy
    return jnp.pad(a, ((0, pr), (0, pc)))


def _pick_class_tile(c_pad, target):
    """Largest multiple of 128 <= target that divides c_pad (c_pad % 128 == 0)."""
    t = max(128, (min(target, c_pad) // 128) * 128)
    while c_pad % t != 0:
        t -= 128
    return t


# ----------------------------------------------------------------------------
# Parameter-time weight preparation (done ONCE, not per training step):
# L2-normalize rows of the [out_features, in_features] weight, transpose to
# [in, out] (lane-dense for the matmul RHS), pad to tile multiples, cast.
# ----------------------------------------------------------------------------
def prepare_arc_weight(weight, *, matmul_dtype=jnp.bfloat16, class_tile=2048):
    w = weight.astype(jnp.float32)
    w = w / jnp.maximum(jnp.sqrt(jnp.sum(w * w, axis=1, keepdims=True)), 1e-12)
    wt = w.T                                             # [in, out]
    in_f, out_f = wt.shape
    cn = max(128, (min(class_tile, _round_up(out_f, 128)) // 128) * 128)
    wt = _pad2(wt, _round_up(in_f, 128), _round_up(out_f, cn))
    return wt.astype(matmul_dtype)


# ----------------------------------------------------------------------------
# Fused kernel (one grid step = one [TB] batch tile x one [Cn] class tile):
#   x_ref   : [TB, IN_pad]  f32 input features (resident across the class axis)
#   w_ref   : [IN_pad, Cn]  pre-normalized, pre-transposed weight (bf16 or f32)
#   me_ref  : [TB, Cn]      f32 effective margin  m_eff = 1 - blended_m
#   out_ref : [TB, Cn]      phi * s
#   cos_ref : [TB, Cn]      cosine
# ----------------------------------------------------------------------------
def _arc_margin_kernel(x_ref, w_ref, me_ref, out_ref, cos_ref, *,
                       s, easy_margin, matmul_dtype):
    x = x_ref[...]
    # Row normalization applied after the matmul as a [TB, 1] rescale
    # (== F.normalize(input) with the same 1e-12 floor).
    inv_xn = jax.lax.rsqrt(
        jnp.maximum(jnp.sum(x * x, axis=1, keepdims=True), 1e-24))

    cosine = jnp.dot(x.astype(matmul_dtype), w_ref[...],
                     preferred_element_type=jnp.float32) * inv_xn
    cos_ref[...] = cosine

    m_eff = me_ref[...]
    cos_m = jnp.cos(m_eff)
    sin_m = jnp.sin(m_eff)
    sine = jnp.sqrt(jnp.clip(1.0 - cosine * cosine, 0.0, 1.0))
    phi = cosine * cos_m - sine * sin_m
    if easy_margin:
        phi = jnp.where(cosine > 0.0, phi, cosine)
    else:
        # trig identities: th = cos(pi-m) = -cos_m ; mm = sin(pi-m)*m = sin_m*m
        phi = jnp.where(cosine > -cos_m, phi, cosine - sin_m * m_eff)
    out_ref[...] = phi * s


# ----------------------------------------------------------------------------
# Per-step forward.  `w_prepared` comes from prepare_arc_weight().
# ----------------------------------------------------------------------------
def arc_margin_forward(x, w_prepared, learned_mg, m, label, epoch, *,
                       s=30.0, temp=0.07, easy_margin=False,
                       learnable_margins=True, class_tile=2048,
                       matmul_dtype=jnp.bfloat16):
    f32 = jnp.float32
    B, IN = x.shape
    C = learned_mg.shape[1]
    IN_pad, C_pad = w_prepared.shape

    # ---- margin schedule (full-row softmax => hoisted out of the class-tiled
    # kernel, per review).  The kernel then streams a single [B, C] operand. ---
    beta = 1.0 - jnp.floor_divide(jnp.asarray(epoch), 15).astype(f32) * 0.1
    m = m.astype(f32)
    mg = jnp.where(m > 1e-12, learned_mg.astype(f32), -1000.0)
    margin = jax.nn.softmax(mg * (1.0 / temp), axis=1)
    if learnable_margins:
        m = jnp.where(label != 0.0, beta * m + (1.0 - beta) * margin, m)
    # TODO(synk): config.randomization branch (torch.normal noise on m) omitted.
    m_eff = 1.0 - m

    # ---- tiling ----
    B_pad = _round_up(B, 8)
    TB = 128 if B_pad > 128 else B_pad
    B_pad = _round_up(B_pad, TB)
    Cn = _pick_class_tile(C_pad, class_tile)

    x_p = _pad2(x.astype(f32), B_pad, IN_pad)
    me_p = _pad2(m_eff, B_pad, C_pad)

    kernel = functools.partial(_arc_margin_kernel, s=float(s),
                               easy_margin=bool(easy_margin),
                               matmul_dtype=matmul_dtype)
    bc = lambda j, i: (i, j)

    out_p, cos_p = pl.pallas_call(
        kernel,
        # Class axis OUTER / batch axis INNER: the weight tile index depends
        # only on j, so each pre-normalized weight tile is DMA'd exactly once
        # and stays resident while the batch axis streams past it.
        grid=(C_pad // Cn, B_pad // TB),
        in_specs=[
            pl.BlockSpec((TB, IN_pad), lambda j, i: (i, 0)),
            pl.BlockSpec((IN_pad, Cn), lambda j, i: (0, j)),
            pl.BlockSpec((TB, Cn), bc),
        ],
        out_specs=(pl.BlockSpec((TB, Cn), bc),
                   pl.BlockSpec((TB, Cn), bc)),
        out_shape=(jax.ShapeDtypeStruct((B_pad, C_pad), f32),
                   jax.ShapeDtypeStruct((B_pad, C_pad), f32)),
        compiler_params=pltpu.CompilerParams(
            dimension_semantics=("parallel", "parallel"),
            vmem_limit_bytes=64 * 1024 * 1024),
    )(x_p, w_prepared, me_p)

    return out_p[:B, :C], cos_p[:B, :C]


# ----------------------------------------------------------------------------
# Pure-JAX reference (mirrors the PyTorch forward) for correctness checks.
# ----------------------------------------------------------------------------
def arc_margin_reference(x, weight, learned_mg, m, label, epoch, *,
                         s, temp, easy_margin, learnable_margins):
    x_n = x / jnp.maximum(jnp.sqrt(jnp.sum(x * x, axis=1, keepdims=True)), 1e-12)
    w_n = weight / jnp.maximum(
        jnp.sqrt(jnp.sum(weight * weight, axis=1, keepdims=True)), 1e-12)
    cosine = jnp.dot(x_n, w_n.T, precision=jax.lax.Precision.HIGHEST)
    beta = 1.0 - (epoch // 15) * 0.1
    mg = jnp.where(m > 1e-12, learned_mg, -1000.0)
    margin = jax.nn.softmax(mg / temp, axis=1)
    if learnable_margins:
        m = jnp.where(label != 0.0, beta * m + (1.0 - beta) * margin, m)
    m = 1.0 - m
    cos_m, sin_m = jnp.cos(m), jnp.sin(m)
    th = jnp.cos(math.pi - m)
    mm = jnp.sin(math.pi - m) * m
    sine = jnp.sqrt(jnp.clip(1.0 - cosine * cosine, 0.0, 1.0))
    phi = cosine * cos_m - sine * sin_m
    if easy_margin:
        phi = jnp.where(cosine > 0.0, phi, cosine)
    else:
        phi = jnp.where(cosine > th, phi, cosine - mm)
    return phi * s, cosine


# ----------------------------------------------------------------------------
if __name__ == "__main__":
    B, IN_FEATURES, OUT_FEATURES = 2, 32, 16
    EPOCH = 20                 # beta = 0.9 -> exercises learnable-margin blend
    S, TEMP = 30.0, 0.07       # config.scale, config.temp

    key = jax.random.PRNGKey(0)
    kx, kw, kmg, km, kmask, klab = jax.random.split(key, 6)

    x = jax.random.normal(kx, (B, IN_FEATURES), dtype=jnp.float32)
    weight = jax.random.normal(kw, (OUT_FEATURES, IN_FEATURES),
                               dtype=jnp.float32) * 0.25     # xavier-ish init
    learned_mg = jax.random.normal(kmg, (B, OUT_FEATURES), dtype=jnp.float32)
    m = jax.random.uniform(km, (B, OUT_FEATURES), jnp.float32, 0.05, 0.5)
    m = m * (jax.random.uniform(kmask, (B, OUT_FEATURES)) > 0.3)  # some exact 0s
    label = (jax.random.uniform(klab, (B, OUT_FEATURES)) > 0.5).astype(jnp.float32)
    epoch = jnp.asarray(EPOCH, dtype=jnp.int32)

    ref_out, ref_cos = arc_margin_reference(
        x, weight, learned_mg, m, label, EPOCH,
        s=S, temp=TEMP, easy_margin=False, learnable_margins=True)

    # --- f32 MXU path (precision-safe configuration) -------------------------
    w_f32 = prepare_arc_weight(weight, matmul_dtype=jnp.float32)
    fwd32 = jax.jit(functools.partial(arc_margin_forward, s=S, temp=TEMP,
                                      easy_margin=False, learnable_margins=True,
                                      matmul_dtype=jnp.float32))
    out32, cos32 = fwd32(x, w_f32, learned_mg, m, label, epoch)
    jax.block_until_ready((out32, cos32))
    assert out32.shape == (B, OUT_FEATURES) and cos32.shape == (B, OUT_FEATURES)
    assert jnp.allclose(cos32, ref_cos, atol=5e-3, rtol=1e-3), "cosine mismatch (f32)"
    assert jnp.allclose(out32, ref_out, atol=1.5e-1, rtol=1e-2), "output mismatch (f32)"

    # --- bf16-input MXU path (v6e/v7x perf configuration, f32 accumulation) --
    w_bf16 = prepare_arc_weight(weight, matmul_dtype=jnp.bfloat16)
    fwd16 = jax.jit(functools.partial(arc_margin_forward, s=S, temp=TEMP,
                                      easy_margin=False, learnable_margins=True,
                                      matmul_dtype=jnp.bfloat16))
    out16, cos16 = fwd16(x, w_bf16, learned_mg, m, label, epoch)
    jax.block_until_ready((out16, cos16))
    assert jnp.allclose(cos16, ref_cos, atol=2e-2, rtol=5e-3), "cosine mismatch (bf16)"
    assert jnp.allclose(out16, ref_out, atol=6e-1, rtol=2e-2), "output mismatch (bf16)"

    print("KERNEL_OK")
</pallas_src>

<mosaic_0001>
module attributes {stable_mosaic.version = 11 : i64} {
  func.func @_arc_margin_kernel(%arg0: i32, %arg1: i32, %arg2: memref<8x128xf32, #tpu.memory_space<vmem>>, %arg3: memref<128x128xf32, #tpu.memory_space<vmem>>, %arg4: memref<8x128xf32, #tpu.memory_space<vmem>>, %arg5: memref<8x128xf32, #tpu.memory_space<vmem>>, %arg6: memref<8x128xf32, #tpu.memory_space<vmem>>) attributes {dimension_semantics = [#tpu.dimension_semantics<parallel>, #tpu.dimension_semantics<parallel>], iteration_bounds = array<i64: 1, 1>, scalar_prefetch = 0 : i64, scratch_operands = 0 : i64, tpu.core_type = #tpu.core_type<tc>, window_params = [{transform_indices = @transform_0, window_bounds = array<i64: 8, 128>}, {transform_indices = @transform_1, window_bounds = array<i64: 128, 128>}, {transform_indices = @transform_2, window_bounds = array<i64: 8, 128>}, {transform_indices = @transform_3, window_bounds = array<i64: 8, 128>}, {transform_indices = @transform_4, window_bounds = array<i64: 8, 128>}]} {
    %c0 = arith.constant 0 : index
    %c0_0 = arith.constant 0 : index
    %0 = vector.load %arg2[%c0, %c0_0] : memref<8x128xf32, #tpu.memory_space<vmem>>, vector<8x128xf32>
    %1 = arith.mulf %0, %0 : vector<8x128xf32>
    %cst = arith.constant dense<0.000000e+00> : vector<8xf32>
    %2 = vector.multi_reduction <add>, %1, %cst [1] : vector<8x128xf32> to vector<8xf32>
    %3 = vector.shape_cast %2 : vector<8xf32> to vector<8x1xf32>
    %cst_1 = arith.constant 1.000000e-24 : f32
    %4 = vector.broadcast %cst_1 : f32 to vector<8x1xf32>
    %5 = arith.maximumf %3, %4 : vector<8x1xf32>
    %6 = math.rsqrt %5 : vector<8x1xf32>
    %c0_2 = arith.constant 0 : index
    %c0_3 = arith.constant 0 : index
    %7 = vector.load %arg3[%c0_2, %c0_3] : memref<128x128xf32, #tpu.memory_space<vmem>>, vector<128x128xf32>
    %cst_4 = arith.constant dense<0.000000e+00> : vector<8x128xf32>
    %8 = tpu.matmul %0, %7, %cst_4 {dimension_numbers = #tpu.dot_dimension_numbers<[1], [0], [0], [1], [0, 0, 1, 1], [], []>} : vector<8x128xf32>, vector<128x128xf32>, vector<8x128xf32> -> vector<8x128xf32>
    %9 = vector.broadcast %6 : vector<8x1xf32> to vector<8x128xf32>
    %10 = arith.mulf %8, %9 : vector<8x128xf32>
    %c0_5 = arith.constant 0 : index
    %c0_6 = arith.constant 0 : index
    %11 = vector.load %arg6[%c0_5, %c0_6] : memref<8x128xf32, #tpu.memory_space<vmem>>, vector<8x128xf32>
    tpu.vector_store %arg6[%c0_5, %c0_6], %10 {strides = array<i32>} : memref<8x128xf32, #tpu.memory_space<vmem>>, vector<8x128xf32>,
    %c0_7 = arith.constant 0 : index
    %c0_8 = arith.constant 0 : index
    %12 = vector.load %arg4[%c0_7, %c0_8] : memref<8x128xf32, #tpu.memory_space<vmem>>, vector<8x128xf32>
    %13 = math.cos %12 : vector<8x128xf32>
    %14 = math.sin %12 : vector<8x128xf32>
    %15 = arith.mulf %10, %10 : vector<8x128xf32>
    %cst_9 = arith.constant 1.000000e+00 : f32
    %16 = vector.broadcast %cst_9 : f32 to vector<8x128xf32>
    %17 = arith.subf %16, %15 : vector<8x128xf32>
    %cst_10 = arith.constant 0.000000e+00 : f32
    %cst_11 = arith.constant 1.000000e+00 : f32
    %18 = vector.broadcast %cst_10 : f32 to vector<8x128xf32>
    %19 = arith.maximumf %18, %17 : vector<8x128xf32>
    %20 = vector.broadcast %cst_11 : f32 to vector<8x128xf32>
    %21 = arith.minimumf %20, %19 : vector<8x128xf32>
    %22 = math.sqrt %21 : vector<8x128xf32>
    %23 = arith.mulf %10, %13 : vector<8x128xf32>
    %24 = arith.mulf %22, %14 : vector<8x128xf32>
    %25 = arith.subf %23, %24 : vector<8x128xf32>
    %cst_12 = arith.constant 0.000000e+00 : f32
    %26 = vector.broadcast %cst_12 : f32 to vector<8x128xf32>
    %27 = arith.subf %26, %13 : vector<8x128xf32>
    %28 = arith.cmpf ogt, %10, %27 : vector<8x128xf32>
    %29 = arith.mulf %14, %12 : vector<8x128xf32>
    %30 = arith.subf %10, %29 : vector<8x128xf32>
    %31 = arith.select %28, %25, %30 : vector<8x128xi1>, vector<8x128xf32>
    %cst_13 = arith.constant 3.000000e+01 : f32
    %32 = vector.broadcast %cst_13 : f32 to vector<8x128xf32>
    %33 = arith.mulf %31, %32 : vector<8x128xf32>
    %c0_14 = arith.constant 0 : index
    %c0_15 = arith.constant 0 : index
    %34 = vector.load %arg5[%c0_14, %c0_15] : memref<8x128xf32, #tpu.memory_space<vmem>>, vector<8x128xf32>
    tpu.vector_store %arg5[%c0_14, %c0_15], %33 {strides = array<i32>} : memref<8x128xf32, #tpu.memory_space<vmem>>, vector<8x128xf32>,
    return
  }
  func.func @transform_0(%arg0: i32, %arg1: i32) -> (i32, i32) {
    %c0_i32 = arith.constant 0 : i32
    %c0_i32_0 = arith.constant 0 : i32
    return %arg1, %c0_i32 : i32, i32
  }
  func.func @transform_1(%arg0: i32, %arg1: i32) -> (i32, i32) {
    %c0_i32 = arith.constant 0 : i32
    %c0_i32_0 = arith.constant 0 : i32
    return %c0_i32, %arg0 : i32, i32
  }
  func.func @transform_2(%arg0: i32, %arg1: i32) -> (i32, i32) {
    %c0_i32 = arith.constant 0 : i32
    return %arg1, %arg0 : i32, i32
  }
  func.func @transform_3(%arg0: i32, %arg1: i32) -> (i32, i32) {
    %c0_i32 = arith.constant 0 : i32
    return %arg1, %arg0 : i32, i32
  }
  func.func @transform_4(%arg0: i32, %arg1: i32) -> (i32, i32) {
    %c0_i32 = arith.constant 0 : i32
    return %arg1, %arg0 : i32, i32
  }
}

</mosaic_0001>

<llo_original>
// kernel: arc_margin_forward.1
$region0: #{arc_margin_forward.1}
  #allocation0 [shape = 'u32[]', space=smem, size = 0x4, offset = 0x4, fixed_abs, tag = 'smem constant byte address 0x4 - core index']
  #allocation1 [shape = 'u32[144,128]{1,0:T(1,128)}', space=vmem, size = 0x12000, scoped, tag = 'internal scratch']
  %s0 = inlined_call_operand.vmem [shape: f32[8,128], index: 0, kind: input, shape index: {}]
  %s1 = inlined_call_operand.hbm [shape: f32[128,128], index: 1, kind: input, shape index: {}]
  %s2 = inlined_call_operand.vmem [shape: f32[8,128], index: 2, kind: input, shape index: {}]
  %s3 = inlined_call_operand.vmem [shape: f32[8,128], index: 3, kind: output, shape index: {0}]
  %s4 = inlined_call_operand.vmem [shape: f32[8,128], index: 4, kind: output, shape index: {1}]
  %5 = xla_tuple %s3, %s4
  %s6 = sld [smem:[#allocation0]]
  $region34: #{arc_margin_forward.1} parent=0
    _
  %s8 = ssub.s32 1, %s6
  %s9 = scalar_select 0, %s8, %s6
  $region1: #{arc_margin_forward.1} parent=0
    #allocation2 [shape = 'u8[65536]{0}', space=vmem, size = 0x10000, scoped, tag = 'input window, operand 1, single buffered']
    #allocation3 [shape = 's32[1]{0}', space=sflag, size = 0x4, scoped, tag = 'scoped memory for arc_margin_forward.1']
    %10 = vsyncpa [#allocation3], 0
    // Predicated region
    $region2: #{arc_margin_forward.1} parent=1 // pred_check
      _
    $region3: #{arc_margin_forward.1} parent=1 // pred_check_branch
      %12 = sbr.rel (0) target = $region5
    $region4: #{arc_margin_forward.1} parent=1 // pred_region
      _
    $region5: #{arc_margin_forward.1} parent=1 // pred_fallthru
      _
    // Predicated region
    $region6: #{arc_margin_forward.1} parent=1 // pred_check
      _
    $region7: #{arc_margin_forward.1} parent=1 // pred_check_branch
      %14 = sbr.rel (0) target = $region9
    $region8: #{arc_margin_forward.1} parent=1 // pred_region
      %s16 = ssub.s32 2048, 2048
      %17 = vsyncadd [#allocation3], %s16
      %s18 = sshll.u32 [#allocation2], 4
      %s19 = int_to_ptr.vmem [resolvable:$true] %s18
      %24 = dma.hbm_to_vmem [thread:$0]  %s1, 2048, %s19, [#allocation3], 128, 128, 8
    $region9: #{arc_margin_forward.1} parent=1 // pred_fallthru
      _
    // Predicated region
    $region10: #{arc_margin_forward.1} parent=1 // pred_check
      _
    $region11: #{arc_margin_forward.1} parent=1 // pred_check_branch
      %26 = sbr.rel (0) target = $region13
    $region12: #{arc_margin_forward.1} parent=1 // pred_region
      _
    $region13: #{arc_margin_forward.1} parent=1 // pred_fallthru
      _
    // Predicated region
    $region14: #{arc_margin_forward.1} parent=1 // pred_check
      _
    $region15: #{arc_margin_forward.1} parent=1 // pred_check_branch
      %28 = sbr.rel (0) target = $region17
    $region16: #{arc_margin_forward.1} parent=1 // pred_region
      %29 = dma.done [#allocation3], 2048
    $region17: #{arc_margin_forward.1} parent=1 // pred_fallthru
      _
    %v30 = vld [vmem:[%s0] sm:$0xff]
    %v31 = vmul.f32 %v30, %v30
    %32 = vadd.xlane.f32.xlu0 %v31
    %v33 = vpop.xlane.xlu0 %32
    %v34 = vmax.f32 %v33, 1e-24
    %v35 = vrsqrt.pop %v34
    %v36 = vld [vmem:[#allocation2] sm:$0xff]
    %v37 = vld [vmem:[#allocation2 + $0x8] sm:$0xff]
    %v38 = vld [vmem:[#allocation2 + $0x10] sm:$0xff]
    %v39 = vld [vmem:[#allocation2 + $0x18] sm:$0xff]
    %v40 = vld [vmem:[#allocation2 + $0x20] sm:$0xff]
    %v41 = vld [vmem:[#allocation2 + $0x28] sm:$0xff]
    %v42 = vld [vmem:[#allocation2 + $0x30] sm:$0xff]
    %v43 = vld [vmem:[#allocation2 + $0x38] sm:$0xff]
    %v44 = vld [vmem:[#allocation2 + $0x40] sm:$0xff]
    %v45 = vld [vmem:[#allocation2 + $0x48] sm:$0xff]
    %v46 = vld [vmem:[#allocation2 + $0x50] sm:$0xff]
    %v47 = vld [vmem:[#allocation2 + $0x58] sm:$0xff]
    %v48 = vld [vmem:[#allocation2 + $0x60] sm:$0xff]
    %v49 = vld [vmem:[#allocation2 + $0x68] sm:$0xff]
    %v50 = vld [vmem:[#allocation2 + $0x70] sm:$0xff]
    %v51 = vld [vmem:[#allocation2 + $0x78] sm:$0xff]
    %52 = vmatprep.subr.mxu0 0.0
    %53 = vmatpush1.msra.mxu0 %v51
    %54 = vmatprep.subr.mxu0 0.0
    %55 = vmatpush1.msra.mxu0 %v50
    %56 = vmatprep.subr.mxu0 0.0
    %57 = vmatpush1.msra.mxu0 %v49
    %58 = vmatprep.subr.mxu0 0.0
    %59 = vmatpush1.msra.mxu0 %v48
    %60 = vmatprep.subr.mxu0 0.0
    %61 = vmatpush1.msra.mxu0 %v47
    %62 = vmatprep.subr.mxu0 0.0
    %63 = vmatpush1.msra.mxu0 %v46
    %64 = vmatprep.subr.mxu0 0.0
    %65 = vmatpush1.msra.mxu0 %v45
    %66 = vmatprep.subr.mxu0 0.0
    %67 = vmatpush1.msra.mxu0 %v44
    %68 = vmatprep.subr.mxu0 0.0
    %69 = vmatpush1.msra.mxu0 %v43
    %70 = vmatprep.subr.mxu0 0.0
    %71 = vmatpush1.msra.mxu0 %v42
    %72 = vmatprep.subr.mxu0 0.0
    %73 = vmatpush1.msra.mxu0 %v41
    %74 = vmatprep.subr.mxu0 0.0
    %75 = vmatpush1.msra.mxu0 %v40
    %76 = vmatprep.subr.mxu0 0.0
    %77 = vmatpush1.msra.mxu0 %v39
    %78 = vmatprep.subr.mxu0 0.0
    %79 = vmatpush1.msra.mxu0 %v38
    %80 = vmatprep.subr.mxu0 0.0
    %81 = vmatpush1.msra.mxu0 %v37
    %82 = vmatprep.subr.mxu0 0.0
    %83 = vmatpush1.msra.mxu0 %v36
    %84 = vmatprep.subr.mxu0 0.0
    %85 = vmatpush2.msra.mxu0 0.0
    %86 = vmatprep.subr.mxu0 0.0
    %87 = vmatpush2.msra.mxu0 0.0
    %88 = vmatprep.subr.mxu0 0.0
    %89 = vmatpush2.msra.mxu0 0.0
    %90 = vmatprep.subr.mxu0 0.0
    %91 = vmatpush2.msra.mxu0 0.0
    %92 = vmatprep.subr.mxu0 0.0
    %93 = vmatpush2.msra.mxu0 0.0
    %94 = vmatprep.subr.mxu0 0.0
    %95 = vmatpush2.msra.mxu0 0.0
    %96 = vmatprep.subr.mxu0 0.0
    %97 = vmatpush2.msra.mxu0 0.0
    %98 = vmatprep.subr.mxu0 0.0
    %99 = vmatpush2.msra.mxu0 0.0
    %100 = vmatprep.subr.mxu0 0.0
    %101 = vmatpush2.msra.mxu0 0.0
    %102 = vmatprep.subr.mxu0 0.0
    %103 = vmatpush2.msra.mxu0 0.0
    %104 = vmatprep.subr.mxu0 0.0
    %105 = vmatpush2.msra.mxu0 0.0
    %106 = vmatprep.subr.mxu0 0.0
    %107 = vmatpush2.msra.mxu0 0.0
    %108 = vmatprep.subr.mxu0 0.0
    %109 = vmatpush2.msra.mxu0 0.0
    %110 = vmatprep.subr.mxu0 0.0
    %111 = vmatpush2.msra.mxu0 0.0
    %112 = vmatprep.subr.mxu0 0.0
    %113 = vmatpush2.msra.mxu0 0.0
    %114 = vmatprep.subr.mxu0 0.0
    %115 = vmatpush2.msra.mxu0 0.0
    %116 = vmatprep.mubr.f32.mxu0 0.0
    %117 = vmatmul.mubr.f32.gmra.mxu0 %v30
    %v118 = vpop.f32.mrf.mxu0
    %v119 = vadd.f32 0.0, %v118
    %v120 = vpop.f32.mrf.mxu0
    %121 = vdwg.mxu0
    %v122 = vmul.f32 %v119, %v35
    %123 = vst [vmem:[%s4] sm:$0xff] %v122
    %v124 = vld [vmem:[%s2] sm:$0xff]
    %v125 = vand.u32 2147483647, %v124
    %vm126 = vcmp.le.f32.partialorder %v125, 0.7853982
    %vm127 = vcmp.lt.s32.totalorder %v124, 0
    %v128 = vand.u32 %v124, 2139095040
    %v129 = vshrl.u32 %v128, 23
    %v130 = vsub.s32 %v129, 127
    %v131 = vand.u32 2147483647, %v124
    %v132 = vand.u32 %v131, 8388607
    %v133 = vor.u32 %v132, 8388608
    %v134 = vsub.s32 0, %v133
    %v135 = vadd.s32 %v130, 1
    %vm136 = vcmp.gt.s32.totalorder %v135, 0
    %v137 = vsel %vm136, %v135, 0
    %v138 = vshrl.u32 %v137, 5
    %v139 = vand.u32 %v137, 31
    %v140 = vsub.s32 32, %v139
    %v141 = vshrl.u32 683565275, %v140
    %v142 = vshll.u32 683565275, %v139
    %v143 = vshrl.u32 2475754826, %v140
    %v144 = vor.u32 %v142, %v143
    %v145 = vshll.u32 2475754826, %v139
    %v146 = vshrl.u32 2131351028, %v140
    %v147 = vor.u32 %v145, %v146
    %v148 = vshll.u32 2131351028, %v139
    %v149 = vshrl.u32 2102212464, %v140
    %v150 = vor.u32 %v148, %v149
    %v151 = vshll.u32 2102212464, %v139
    %v152 = vshrl.u32 920167782, %v140
    %v153 = vor.u32 %v151, %v152
    %v154 = vshll.u32 920167782, %v139
    %v155 = vshrl.u32 1326507024, %v140
    %v156 = vor.u32 %v154, %v155
    %vm157 = vcmp.lt.s32.totalorder %v138, 1
    %vm158 = vcmp.lt.s32.totalorder %v138, 2
    %vm159 = vcmp.lt.s32.totalorder %v138, 3
    %vm160 = vcmp.lt.s32.totalorder %v138, 4
    %v161 = vsel %vm157, %v141, %v144
    %v162 = vsel %vm160, %v150, 2102212464
    %v163 = vsel %vm159, %v147, %v162
    %v164 = vsel %vm158, %v161, %v163
    %v165 = vsel %vm157, %v144, %v147
    %v166 = vsel %vm160, %v153, 920167782
    %v167 = vsel %vm159, %v150, %v166
    %v168 = vsel %vm158, %v165, %v167
    %v169 = vsel %vm157, %v147, %v150
    %v170 = vsel %vm160, %v156, 1326507024
    %v171 = vsel %vm159, %v153, %v170
    %v172 = vsel %vm158, %v169, %v171
    %v173 = vshll.u32 %v133, 8
    %v174 = vmul.u32.u64.compose %v173, %v172
    %v175 = vextract.low.u32 %v174
    %v176 = vextract.high.u32 %v174
    %v177 = vmul.u32.u64.compose %v173, %v168
    %v178 = vextract.low.u32 %v177
    %v179 = vextract.high.u32 %v177
    %v180 = vmul.u32 %v173, %v164
    %v181 = vadd.s32 %v176, %v178
    %vm182 = vc.u32 %v176, %v178
    %v183 = vadd.s32 %v179, 1
    %v184 = vsel %vm182, %v183, %v179
    %v185 = vadd.s32 %v180, %v184
    %v186 = vadd.s32 %v185, 536870912
    %v187 = vshrl.u32 %v186, 30
    %v188 = vshll.u32 %v187, 30
    %v189 = vsub.s32 %v185, %v188
    %vm190 = vcmp.lt.s32.totalorder %v189, 0
    %v191 = vsub.s32 0, %v189
    %v192 = vsel %vm190, %v191, %v189
    %v193 = vclz %v192
    %v194 = vsub.s32 %v193, 2
    %vm195 = vcmp.gt.s32.totalorder 0, %v194
    %v196 = vsel %vm195, 0, %v194
    %v197 = vsub.s32 32, %v196
    %v198 = vshll.u32 %v189, %v196
    %v199 = vshrl.u32 %v181, %v197
    %v200 = vor.u32 %v198, %v199
    %v201 = vsub.s32 4294967266, %v196
    %v202 = vadd.s32 %v201, 127
    %v203 = vshll.u32 %v202, 23
    %v204 = vor.u32 4788187, %v203
    %v205 = vand.u32 2147483647, %v204
    %v207 = vcvt.s32.f32 %v200
    %v208 = vmul.f32 %v207, %v205
    %v209 = vxor.u32 %v208, 2147483648
    %v210 = vsel %vm127, %v209, %v208
    %v211 = vsub.s32 4, %v187
    %v212 = vsel %vm127, %v211, %v187
    %v213 = vsel %vm126, %v124, %v210
    %v214 = vsel %vm126, 0, %v212
    %v215 = vcosq.f32.pop %v213
    %v216 = vsinq.f32.pop %v213
    %vm217 = vweird.f32 %v124
    %v218 = vand.u32 %v214, 3
    %vm219 = vcmp.lt.s32.totalorder %v218, 2
    %vm220 = vcmp.eq.s32.totalorder %v218, 0
    %v221 = vxor.u32 %v216, 2147483648
    %v222 = vsel %vm220, %v215, %v221
    %vm223 = vcmp.eq.s32.totalorder %v218, 2
    %v224 = vxor.u32 %v215, 2147483648
    %v225 = vsel %vm223, %v224, %v216
    %v226 = vsel %vm219, %v222, %v225
    %v227 = vsel %vm217, nan, %v226
    %v228 = vand.u32 2147483647, %v124
    %vm229 = vcmp.le.f32.partialorder %v228, 0.7853982
    %vm230 = vcmp.lt.s32.totalorder %v124, 0
    %v231 = vand.u32 %v124, 2139095040
    %v232 = vshrl.u32 %v231, 23
    %v233 = vsub.s32 %v232, 127
    %v234 = vand.u32 2147483647, %v124
    %v235 = vand.u32 %v234, 8388607
    %v236 = vor.u32 %v235, 8388608
    %v237 = vsub.s32 0, %v236
    %v238 = vadd.s32 %v233, 1
    %vm239 = vcmp.gt.s32.totalorder %v238, 0
    %v240 = vsel %vm239, %v238, 0
    %v241 = vshrl.u32 %v240, 5
    %v242 = vand.u32 %v240, 31
    %v243 = vsub.s32 32, %v242
    %v244 = vshrl.u32 683565275, %v243
    %v245 = vshll.u32 683565275, %v242
    %v246 = vshrl.u32 2475754826, %v243
    %v247 = vor.u32 %v245, %v246
    %v248 = vshll.u32 2475754826, %v242
    %v249 = vshrl.u32 2131351028, %v243
    %v250 = vor.u32 %v248, %v249
    %v251 = vshll.u32 2131351028, %v242
    %v252 = vshrl.u32 2102212464, %v243
    %v253 = vor.u32 %v251, %v252
    %v254 = vshll.u32 2102212464, %v242
    %v255 = vshrl.u32 920167782, %v243
    %v256 = vor.u32 %v254, %v255
    %v257 = vshll.u32 920167782, %v242
    %v258 = vshrl.u32 1326507024, %v243
    %v259 = vor.u32 %v257, %v258
    %vm260 = vcmp.lt.s32.totalorder %v241, 1
    %vm261 = vcmp.lt.s32.totalorder %v241, 2
    %vm262 = vcmp.lt.s32.totalorder %v241, 3
    %vm263 = vcmp.lt.s32.totalorder %v241, 4
    %v264 = vsel %vm260, %v244, %v247
    %v265 = vsel %vm263, %v253, 2102212464
    %v266 = vsel %vm262, %v250, %v265
    %v267 = vsel %vm261, %v264, %v266
    %v268 = vsel %vm260, %v247, %v250
    %v269 = vsel %vm263, %v256, 920167782
    %v270 = vsel %vm262, %v253, %v269
    %v271 = vsel %vm261, %v268, %v270
    %v272 = vsel %vm260, %v250, %v253
    %v273 = vsel %vm263, %v259, 1326507024
    %v274 = vsel %vm262, %v256, %v273
    %v275 = vsel %vm261, %v272, %v274
    %v276 = vshll.u32 %v236, 8
    %v277 = vmul.u32.u64.compose %v276, %v275
    %v278 = vextract.low.u32 %v277
    %v279 = vextract.high.u32 %v277
    %v280 = vmul.u32.u64.compose %v276, %v271
    %v281 = vextract.low.u32 %v280
    %v282 = vextract.high.u32 %v280
    %v283 = vmul.u32 %v276, %v267
    %v284 = vadd.s32 %v279, %v281
    %vm285 = vc.u32 %v279, %v281
    %v286 = vadd.s32 %v282, 1
    %v287 = vsel %vm285, %v286, %v282
    %v288 = vadd.s32 %v283, %v287
    %v289 = vadd.s32 %v288, 536870912
    %v290 = vshrl.u32 %v289, 30
    %v291 = vshll.u32 %v290, 30
    %v292 = vsub.s32 %v288, %v291
    %vm293 = vcmp.lt.s32.totalorder %v292, 0
    %v294 = vsub.s32 0, %v292
    %v295 = vsel %vm293, %v294, %v292
    %v296 = vclz %v295
    %v297 = vsub.s32 %v296, 2
    %vm298 = vcmp.gt.s32.totalorder 0, %v297
    %v299 = vsel %vm298, 0, %v297
    %v300 = vsub.s32 32, %v299
    %v301 = vshll.u32 %v292, %v299
    %v302 = vshrl.u32 %v284, %v300
    %v303 = vor.u32 %v301, %v302
    %v304 = vsub.s32 4294967266, %v299
    %v305 = vadd.s32 %v304, 127
    %v306 = vshll.u32 %v305, 23
    %v307 = vor.u32 4788187, %v306
    %v308 = vand.u32 2147483647, %v307
    %v310 = vcvt.s32.f32 %v303
    %v311 = vmul.f32 %v310, %v308
    %v312 = vxor.u32 %v311, 2147483648
    %v313 = vsel %vm230, %v312, %v311
    %v314 = vsub.s32 4, %v290
    %v315 = vsel %vm230, %v314, %v290
    %v316 = vsel %vm229, %v124, %v313
    %v317 = vsel %vm229, 0, %v315
    %v318 = vcosq.f32.pop %v316
    %v319 = vsinq.f32.pop %v316
    %vm320 = vweird.f32 %v124
    %v321 = vadd.s32 %v317, 3
    %v322 = vand.u32 %v321, 3
    %vm323 = vcmp.lt.s32.totalorder %v322, 2
    %vm324 = vcmp.eq.s32.totalorder %v322, 0
    %v325 = vxor.u32 %v319, 2147483648
    %v326 = vsel %vm324, %v318, %v325
    %vm327 = vcmp.eq.s32.totalorder %v322, 2
    %v328 = vxor.u32 %v318, 2147483648
    %v329 = vsel %vm327, %v328, %v319
    %v330 = vsel %vm323, %v326, %v329
    %v331 = vsel %vm320, nan, %v330
    %v332 = vmul.f32 %v122, %v122
    %v333 = vsub.f32 1.0, %v332
    %v334 = vmax.f32 %v333, 0.0
    %v335 = vmin.f32 %v334, 1.0
    %v336 = vrsqrt.pop %v335
    %v337 = vmul.f32 %v335, %v336
    %vm338 = vcmp.eq.f32.partialorder %v335, inf
    %v339 = vsel %vm338, %v335, %v337
    %vm340 = vcmp.eq.f32.partialorder %v335, 0.0
    %v341 = vand.u32 %v335, 2147483648
    %v342 = vsel %vm340, %v341, %v339
    %v343 = vmul.f32 %v122, %v227
    %v344 = vmul.f32 %v342, %v331
    %v345 = vsub.f32 %v343, %v344
    %v346 = vsub.f32 0.0, %v227
    %vm347 = vcmp.gt.f32.partialorder %v122, %v346
    %v348 = vmul.f32 %v331, %v124
    %v349 = vsub.f32 %v122, %v348
    %v350 = vsel %vm347, %v345, %v349
    %v351 = vmul.f32 %v350, 30.0
    %352 = vst [vmem:[%s3] sm:$0xff] %v351
    // Predicated region
    $region18: #{arc_margin_forward.1} parent=1 // pred_check
      _
    $region19: #{arc_margin_forward.1} parent=1 // pred_check_branch
      %354 = sbr.rel (0) target = $region21
    $region20: #{arc_margin_forward.1} parent=1 // pred_region
      _
    $region21: #{arc_margin_forward.1} parent=1 // pred_fallthru
      _
    // Predicated region
    $region22: #{arc_margin_forward.1} parent=1 // pred_check
      _
    $region23: #{arc_margin_forward.1} parent=1 // pred_check_branch
      %356 = sbr.rel (0) target = $region25
    $region24: #{arc_margin_forward.1} parent=1 // pred_region
      _
    $region25: #{arc_margin_forward.1} parent=1 // pred_fallthru
      _
    // Predicated region
    $region26: #{arc_margin_forward.1} parent=1 // pred_check
      _
    $region27: #{arc_margin_forward.1} parent=1 // pred_check_branch
      %358 = sbr.rel (0) target = $region29
    $region28: #{arc_margin_forward.1} parent=1 // pred_region
      _
    $region29: #{arc_margin_forward.1} parent=1 // pred_fallthru
      _
    // Predicated region
    $region30: #{arc_margin_forward.1} parent=1 // pred_check
      _
    $region31: #{arc_margin_forward.1} parent=1 // pred_check_branch
      %360 = sbr.rel (0) target = $region33
    $region32: #{arc_margin_forward.1} parent=1 // pred_region
      _
    $region33: #{arc_margin_forward.1} parent=1 // pred_fallthru
      _
    %361 = vsyncpa [#allocation3], 1

</llo_original>
